<compile_context>
chip_gen: v7x
topology: tpu7x:2x2x1
jax: 0.10.0
libtpu: 0.0.40
codegen_flags: <defaults>
</compile_context>

<pallas_src>
import functools

import jax
import jax.numpy as jnp
import numpy as np
from jax.experimental import pallas as pl
from jax.experimental.pallas import tpu as pltpu


def _group_rows(sq, acc_rows):
    """Reduce a (TH, WD) tile of squared diffs to (acc_rows, WD).

    When TH is a multiple of acc_rows this is just cross-vreg VPU adds (no
    cross-lane work); otherwise it falls back to a single sublane reduce."""
    th, wd = sq.shape
    if acc_rows == th:
        return sq
    if acc_rows > 1 and th % acc_rows == 0:
        return jnp.sum(sq.reshape(th // acc_rows, acc_rows, wd), axis=0)
    return jnp.sum(sq, axis=0, keepdims=True)


def _tv3d_kernel(masks_ref, x_ref, oh_ref, ow_ref, od_ref,
                 acc_h, acc_w, acc_d, carry_ref,
                 *, TH, H, W, D, has_tail):
    j = pl.program_id(1)            # H-tile index (innermost, sequential)
    WD = W * D

    v = x_ref[...].astype(jnp.float32)                        # (TH, WD)

    @pl.when(j == 0)
    def _():
        acc_h[...] = jnp.zeros_like(acc_h)
        acc_w[...] = jnp.zeros_like(acc_w)
        acc_d[...] = jnp.zeros_like(acc_d)
        # Prime the carry with row 0 so the first H "boundary" diff is 0 and
        # uninitialized scratch is never read.
        carry_ref[...] = v[0:1, :]

    r_idx = jax.lax.broadcasted_iota(jnp.int32, (TH, 1), 0)   # (TH, 1)

    if has_tail:
        row_valid = (j * TH + r_idx) < H                      # (TH, 1) bool

        def _mask_rows(sq):
            # select (not multiply): padded tail rows may hold inf/NaN garbage
            return jnp.where(row_valid, sq, 0.0)
    else:
        def _mask_rows(sq):
            return sq

    acc_rows = acc_h.shape[0]

    # ---- H differences: v[g] - v[g-1]; carry supplies the previous tile's last row.
    if H > 1:
        prev = pltpu.roll(v, 1, axis=0)                       # prev[r] = v[r-1] (row 0 wraps)
        prev = jnp.where(r_idx == 0, carry_ref[...], prev)    # row 0 <- carried row
        dh = v - prev
        acc_h[...] += _group_rows(_mask_rows(dh * dh), acc_rows)

    # ---- W differences: lane shift by D (next w, same d); last-w lanes masked.
    if W > 1:
        dw = pltpu.roll(v, WD - D, axis=1) - v                # neighbour at +D lanes
        acc_w[...] += _group_rows(_mask_rows((dw * dw) * masks_ref[1:2, :]), acc_rows)

    # ---- D differences: lane shift by 1 (next d); last-d lanes masked.
    if D > 1:
        dd = pltpu.roll(v, WD - 1, axis=1) - v                # neighbour at +1 lane
        acc_d[...] += _group_rows(_mask_rows((dd * dd) * masks_ref[0:1, :]), acc_rows)

    # Carry this tile's last row for the next H-tile of the same slab.
    if H > 1:
        carry_ref[...] = v[TH - 1:TH, :]

    # Per-slab epilogue: the only cross-lane reduction + tiny (1,1) stores.
    @pl.when(j == pl.num_programs(1) - 1)
    def _():
        oh_ref[...] = jnp.sum(acc_h[...], keepdims=True).reshape(1, 1)
        ow_ref[...] = jnp.sum(acc_w[...], keepdims=True).reshape(1, 1)
        od_ref[...] = jnp.sum(acc_d[...], keepdims=True).reshape(1, 1)


def _default_vmem_limit_bytes():
    """Generation-aware VMEM limit: ~3/4 of per-core capacity, capped at 100 MiB."""
    try:
        cap = int(pltpu.get_tpu_info().vmem_capacity_bytes)
    except Exception:
        cap = 0
    if cap <= 0:
        cap = 64 * 1024 * 1024       # conservative default (v7x per-TensorCore)
    return min((cap * 3) // 4, 100 * 1024 * 1024)


def _pick_h_tile(H, WD, budget_bytes):
    """Largest H-tile whose f32 working set fits the budget.

    Returns either H (whole slab -> single H step, no carry / tail work) or a
    multiple of 8 (keeps the (8,128) block constraint without requiring that
    the tile divide H; the tail tile is masked in-kernel)."""
    plane = WD * 4
    if H * plane <= budget_bytes:
        return H
    th = (budget_bytes // plane) // 8 * 8
    return max(8, min(th, H))


def tv_loss(x, tv_weight=1.0, *, tile_budget_bytes=None, vmem_limit_bytes=None):
    """Pallas TPU equivalent of TVLoss.forward; x has shape (N, C, H, W, D)."""
    N, C, H, W, D = (int(s) for s in x.shape)
    NC, WD = N * C, W * D
    x3 = x.reshape(NC, H, WD)        # lane-dense last axis; metadata-only reshape

    if vmem_limit_bytes is None:
        vmem_limit_bytes = _default_vmem_limit_bytes()
    if tile_budget_bytes is None:
        tile_budget_bytes = min(4 * 1024 * 1024, vmem_limit_bytes // 8)

    TH = _pick_h_tile(H, WD, tile_budget_bytes)
    n_ht = pl.cdiv(H, TH)
    has_tail = (H % TH) != 0
    if TH % 8 == 0:
        acc_rows = 8                 # grouped-by-8 accumulation: pure VPU adds per tile
    elif TH <= 8:
        acc_rows = TH                # tiny tile: accumulate at tile shape directly
    else:
        acc_rows = 1                 # whole-slab odd H: one sublane reduce per slab

    # Lane masks for the flattened W*D axis (row 0: valid D-pairs, row 1: valid
    # W-pairs).  Precomputed on host -> no vector integer div/mod in-kernel.
    lane = np.arange(WD)
    masks = jnp.asarray(np.stack([(lane % D) != (D - 1),
                                  lane < (W - 1) * D]).astype(np.float32))

    kernel = functools.partial(_tv3d_kernel, TH=TH, H=H, W=W, D=D, has_tail=has_tail)

    out_sds = jax.ShapeDtypeStruct((NC, 1, 1), jnp.float32)
    out_spec = pl.BlockSpec((None, 1, 1), lambda i, j: (i, 0, 0))
    acc_spec = pltpu.VMEM((acc_rows, WD), jnp.float32)

    # TODO(synk): if NC == 1 on a multi-TensorCore part (v7x), shard the H-tile
    # axis across cores instead so both cores get work.
    oh, ow, od = pl.pallas_call(
        kernel,
        out_shape=(out_sds, out_sds, out_sds),
        grid=(NC, n_ht),
        in_specs=[pl.BlockSpec((2, WD), lambda i, j: (0, 0)),
                  pl.BlockSpec((None, TH, WD), lambda i, j: (i, j, 0))],
        out_specs=(out_spec, out_spec, out_spec),
        scratch_shapes=[acc_spec, acc_spec, acc_spec,
                        pltpu.VMEM((1, WD), jnp.float32)],
        compiler_params=pltpu.CompilerParams(
            dimension_semantics=("parallel", "arbitrary"),
            vmem_limit_bytes=vmem_limit_bytes),
    )(masks, x3)

    h_tv = jnp.sum(oh)
    w_tv = jnp.sum(ow)
    d_tv = jnp.sum(od)
    count_h = C * (H - 1) * W * D
    count_w = C * H * (W - 1) * D
    count_d = C * H * W * (D - 1)
    return tv_weight * 2.0 * (h_tv / count_h + w_tv / count_w + d_tv / count_d) / N


def tv_loss_reference(x, tv_weight=1.0):
    """Pure-JAX mirror of the torch forward, for validation."""
    x = x.astype(jnp.float32)
    N, C, H, W, D = x.shape
    h_tv = jnp.sum(jnp.square(x[:, :, 1:, :, :] - x[:, :, :-1, :, :]))
    w_tv = jnp.sum(jnp.square(x[:, :, :, 1:, :] - x[:, :, :, :-1, :]))
    d_tv = jnp.sum(jnp.square(x[:, :, :, :, 1:] - x[:, :, :, :, :-1]))
    count_h = C * (H - 1) * W * D
    count_w = C * H * (W - 1) * D
    count_d = C * H * W * (D - 1)
    return tv_weight * 2.0 * (h_tv / count_h + w_tv / count_w + d_tv / count_d) / N


if __name__ == "__main__":
    key = jax.random.PRNGKey(0)
    # Distinct spatial dims to verify axis order; W*D = 128 keeps the flattened
    # last axis exactly one lane-group wide at this toy size.
    N, C, H, W, D = 2, 3, 20, 16, 8
    x = jax.random.normal(key, (N, C, H, W, D), dtype=jnp.float32)

    y_ref = tv_loss_reference(x, tv_weight=1.0)

    # Three configurations: small tiles with a partial tail tile (exercises the
    # cross-tile carry + tail masking), medium tiles (grouped-row accumulation),
    # and the default whole-slab path.  Production calls just use defaults.
    results = {
        "TH=8 tiled": tv_loss(x, tile_budget_bytes=4 * 1024),
        "TH=16 tiled": tv_loss(x, tile_budget_bytes=8 * 1024),
        "whole-slab": tv_loss(x),
    }
    for name, y in results.items():
        y = jax.block_until_ready(y)
        if not np.allclose(np.asarray(y), np.asarray(y_ref), atol=1e-4, rtol=1e-4):
            raise AssertionError(
                f"{name}: kernel={np.asarray(y)} ref={np.asarray(y_ref)}")
    print("KERNEL_OK")
</pallas_src>

<mosaic_0001>
module attributes {stable_mosaic.version = 11 : i64} {
  func.func @_tv3d_kernel(%arg0: i32, %arg1: i32, %arg2: memref<2x128xf32, #tpu.memory_space<vmem>>, %arg3: memref<1x8x128xf32, #tpu.memory_space<vmem>>, %arg4: memref<1x1x1xf32, #tpu.memory_space<vmem>>, %arg5: memref<1x1x1xf32, #tpu.memory_space<vmem>>, %arg6: memref<1x1x1xf32, #tpu.memory_space<vmem>>, %arg7: memref<8x128xf32, #tpu.memory_space<vmem>>, %arg8: memref<8x128xf32, #tpu.memory_space<vmem>>, %arg9: memref<8x128xf32, #tpu.memory_space<vmem>>, %arg10: memref<1x128xf32, #tpu.memory_space<vmem>>) attributes {dimension_semantics = [#tpu.dimension_semantics<parallel>, #tpu.dimension_semantics<arbitrary>], iteration_bounds = array<i64: 6, 3>, scalar_prefetch = 0 : i64, scratch_operands = 4 : i64, tpu.core_type = #tpu.core_type<tc>, window_params = [{pipeline_mode = #tpu.pipeline_mode<synchronous>, transform_indices = @transform_0, window_bounds = array<i64: 2, 128>}, {transform_indices = @transform_1, window_bounds = array<i64: 1, 8, 128>}, {transform_indices = @transform_2, window_bounds = array<i64: 1, 1, 1>}, {transform_indices = @transform_3, window_bounds = array<i64: 1, 1, 1>}, {transform_indices = @transform_4, window_bounds = array<i64: 1, 1, 1>}]} {
    %c0 = arith.constant 0 : index
    %c0_0 = arith.constant 0 : index
    %c0_1 = arith.constant 0 : index
    %0 = vector.load %arg3[%c0, %c0_0, %c0_1] : memref<1x8x128xf32, #tpu.memory_space<vmem>>, vector<1x8x128xf32>
    %1 = vector.shape_cast %0 : vector<1x8x128xf32> to vector<8x128xf32>
    %c0_i32 = arith.constant 0 : i32
    %2 = arith.cmpi eq, %arg1, %c0_i32 : i32
    %3 = arith.extui %2 : i1 to i32
    %c0_i32_2 = arith.constant 0 : i32
    %4 = arith.cmpi ne, %3, %c0_i32_2 : i32
    scf.if %4 {
      %cst_26 = arith.constant 0.000000e+00 : f32
      %60 = vector.broadcast %cst_26 : f32 to vector<8x128xf32>
      %c0_27 = arith.constant 0 : index
      %c0_28 = arith.constant 0 : index
      %61 = vector.load %arg7[%c0_27, %c0_28] : memref<8x128xf32, #tpu.memory_space<vmem>>, vector<8x128xf32>
      tpu.vector_store %arg7[%c0_27, %c0_28], %60 {strides = array<i32>} : memref<8x128xf32, #tpu.memory_space<vmem>>, vector<8x128xf32>,
      %cst_29 = arith.constant 0.000000e+00 : f32
      %62 = vector.broadcast %cst_29 : f32 to vector<8x128xf32>
      %c0_30 = arith.constant 0 : index
      %c0_31 = arith.constant 0 : index
      %63 = vector.load %arg8[%c0_30, %c0_31] : memref<8x128xf32, #tpu.memory_space<vmem>>, vector<8x128xf32>
      tpu.vector_store %arg8[%c0_30, %c0_31], %62 {strides = array<i32>} : memref<8x128xf32, #tpu.memory_space<vmem>>, vector<8x128xf32>,
      %cst_32 = arith.constant 0.000000e+00 : f32
      %64 = vector.broadcast %cst_32 : f32 to vector<8x128xf32>
      %c0_33 = arith.constant 0 : index
      %c0_34 = arith.constant 0 : index
      %65 = vector.load %arg9[%c0_33, %c0_34] : memref<8x128xf32, #tpu.memory_space<vmem>>, vector<8x128xf32>
      tpu.vector_store %arg9[%c0_33, %c0_34], %64 {strides = array<i32>} : memref<8x128xf32, #tpu.memory_space<vmem>>, vector<8x128xf32>,
      %66 = vector.extract_strided_slice %1 {offsets = [0, 0], sizes = [1, 128], strides = [1, 1]} : vector<8x128xf32> to vector<1x128xf32>
      %c0_35 = arith.constant 0 : index
      %c0_36 = arith.constant 0 : index
      %67 = vector.load %arg10[%c0_35, %c0_36] : memref<1x128xf32, #tpu.memory_space<vmem>>, vector<1x128xf32>
      tpu.vector_store %arg10[%c0_35, %c0_36], %66 {strides = array<i32>} : memref<1x128xf32, #tpu.memory_space<vmem>>, vector<1x128xf32>,
    } else {
    }
    %5 = tpu.iota {dimensions = array<i32: 0>} : vector<8x1xi32>
    %c8_i32 = arith.constant 8 : i32
    %6 = arith.muli %arg1, %c8_i32 : i32
    %7 = vector.broadcast %6 : i32 to vector<8x1xi32>
    %8 = arith.addi %7, %5 : vector<8x1xi32>
    %c20_i32 = arith.constant 20 : i32
    %9 = vector.broadcast %c20_i32 : i32 to vector<8x1xi32>
    %10 = arith.cmpi slt, %8, %9 : vector<8x1xi32>
    %c1_i32 = arith.constant 1 : i32
    %11 = tpu.dynamic_rotate %1 by %c1_i32 dim 0 : vector<8x128xf32>, i32 -> vector<8x128xf32>
    %c0_i32_3 = arith.constant 0 : i32
    %12 = vector.broadcast %c0_i32_3 : i32 to vector<8x1xi32>
    %13 = arith.cmpi eq, %5, %12 : vector<8x1xi32>
    %c0_4 = arith.constant 0 : index
    %c0_5 = arith.constant 0 : index
    %14 = vector.load %arg10[%c0_4, %c0_5] : memref<1x128xf32, #tpu.memory_space<vmem>>, vector<1x128xf32>
    %15 = vector.shape_cast %13 : vector<8x1xi1> to vector<8x1xi1>
    %16 = vector.broadcast %15 : vector<8x1xi1> to vector<8x128xi1>
    %17 = vector.shape_cast %14 : vector<1x128xf32> to vector<1x128xf32>
    %18 = vector.broadcast %17 : vector<1x128xf32> to vector<8x128xf32>
    %19 = arith.select %16, %18, %11 : vector<8x128xi1>, vector<8x128xf32>
    %20 = arith.subf %1, %19 : vector<8x128xf32>
    %c0_6 = arith.constant 0 : index
    %c0_7 = arith.constant 0 : index
    %21 = vector.load %arg7[%c0_6, %c0_7] : memref<8x128xf32, #tpu.memory_space<vmem>>, vector<8x128xf32>
    %22 = arith.mulf %20, %20 : vector<8x128xf32>
    %cst = arith.constant 0.000000e+00 : f32
    %23 = vector.shape_cast %10 : vector<8x1xi1> to vector<8x1xi1>
    %24 = vector.broadcast %23 : vector<8x1xi1> to vector<8x128xi1>
    %25 = vector.broadcast %cst : f32 to vector<8x128xf32>
    %26 = arith.select %24, %22, %25 : vector<8x128xi1>, vector<8x128xf32>
    %27 = arith.addf %21, %26 : vector<8x128xf32>
    %c0_8 = arith.constant 0 : index
    %c0_9 = arith.constant 0 : index
    %28 = vector.load %arg7[%c0_8, %c0_9] : memref<8x128xf32, #tpu.memory_space<vmem>>, vector<8x128xf32>
    tpu.vector_store %arg7[%c0_8, %c0_9], %27 {strides = array<i32>} : memref<8x128xf32, #tpu.memory_space<vmem>>, vector<8x128xf32>,
    %c120_i32 = arith.constant 120 : i32
    %29 = tpu.dynamic_rotate %1 by %c120_i32 dim 1 : vector<8x128xf32>, i32 -> vector<8x128xf32>
    %30 = arith.subf %29, %1 : vector<8x128xf32>
    %c0_10 = arith.constant 0 : index
    %c0_11 = arith.constant 0 : index
    %31 = vector.load %arg8[%c0_10, %c0_11] : memref<8x128xf32, #tpu.memory_space<vmem>>, vector<8x128xf32>
    %32 = arith.mulf %30, %30 : vector<8x128xf32>
    %c1 = arith.constant 1 : index
    %c0_12 = arith.constant 0 : index
    %33 = vector.load %arg2[%c1, %c0_12] : memref<2x128xf32, #tpu.memory_space<vmem>>, vector<1x128xf32>
    %34 = vector.broadcast %33 : vector<1x128xf32> to vector<8x128xf32>
    %35 = arith.mulf %32, %34 : vector<8x128xf32>
    %cst_13 = arith.constant 0.000000e+00 : f32
    %36 = vector.shape_cast %10 : vector<8x1xi1> to vector<8x1xi1>
    %37 = vector.broadcast %36 : vector<8x1xi1> to vector<8x128xi1>
    %38 = vector.broadcast %cst_13 : f32 to vector<8x128xf32>
    %39 = arith.select %37, %35, %38 : vector<8x128xi1>, vector<8x128xf32>
    %40 = arith.addf %31, %39 : vector<8x128xf32>
    %c0_14 = arith.constant 0 : index
    %c0_15 = arith.constant 0 : index
    %41 = vector.load %arg8[%c0_14, %c0_15] : memref<8x128xf32, #tpu.memory_space<vmem>>, vector<8x128xf32>
    tpu.vector_store %arg8[%c0_14, %c0_15], %40 {strides = array<i32>} : memref<8x128xf32, #tpu.memory_space<vmem>>, vector<8x128xf32>,
    %c127_i32 = arith.constant 127 : i32
    %42 = tpu.dynamic_rotate %1 by %c127_i32 dim 1 : vector<8x128xf32>, i32 -> vector<8x128xf32>
    %43 = arith.subf %42, %1 : vector<8x128xf32>
    %c0_16 = arith.constant 0 : index
    %c0_17 = arith.constant 0 : index
    %44 = vector.load %arg9[%c0_16, %c0_17] : memref<8x128xf32, #tpu.memory_space<vmem>>, vector<8x128xf32>
    %45 = arith.mulf %43, %43 : vector<8x128xf32>
    %c0_18 = arith.constant 0 : index
    %c0_19 = arith.constant 0 : index
    %46 = vector.load %arg2[%c0_18, %c0_19] : memref<2x128xf32, #tpu.memory_space<vmem>>, vector<1x128xf32>
    %47 = vector.broadcast %46 : vector<1x128xf32> to vector<8x128xf32>
    %48 = arith.mulf %45, %47 : vector<8x128xf32>
    %cst_20 = arith.constant 0.000000e+00 : f32
    %49 = vector.shape_cast %10 : vector<8x1xi1> to vector<8x1xi1>
    %50 = vector.broadcast %49 : vector<8x1xi1> to vector<8x128xi1>
    %51 = vector.broadcast %cst_20 : f32 to vector<8x128xf32>
    %52 = arith.select %50, %48, %51 : vector<8x128xi1>, vector<8x128xf32>
    %53 = arith.addf %44, %52 : vector<8x128xf32>
    %c0_21 = arith.constant 0 : index
    %c0_22 = arith.constant 0 : index
    %54 = vector.load %arg9[%c0_21, %c0_22] : memref<8x128xf32, #tpu.memory_space<vmem>>, vector<8x128xf32>
    tpu.vector_store %arg9[%c0_21, %c0_22], %53 {strides = array<i32>} : memref<8x128xf32, #tpu.memory_space<vmem>>, vector<8x128xf32>,
    %55 = vector.extract_strided_slice %1 {offsets = [7, 0], sizes = [1, 128], strides = [1, 1]} : vector<8x128xf32> to vector<1x128xf32>
    %c0_23 = arith.constant 0 : index
    %c0_24 = arith.constant 0 : index
    %56 = vector.load %arg10[%c0_23, %c0_24] : memref<1x128xf32, #tpu.memory_space<vmem>>, vector<1x128xf32>
    tpu.vector_store %arg10[%c0_23, %c0_24], %55 {strides = array<i32>} : memref<1x128xf32, #tpu.memory_space<vmem>>, vector<1x128xf32>,
    %c2_i32 = arith.constant 2 : i32
    %57 = arith.cmpi eq, %arg1, %c2_i32 : i32
    %58 = arith.extui %57 : i1 to i32
    %c0_i32_25 = arith.constant 0 : i32
    %59 = arith.cmpi ne, %58, %c0_i32_25 : i32
    scf.if %59 {
      %c0_26 = arith.constant 0 : index
      %c0_27 = arith.constant 0 : index
      %60 = vector.load %arg7[%c0_26, %c0_27] : memref<8x128xf32, #tpu.memory_space<vmem>>, vector<8x128xf32>
      %61 = vector.shape_cast %60 : vector<8x128xf32> to vector<1x8x128xf32>
      %cst_28 = arith.constant dense<0.000000e+00> : vector<1xf32>
      %62 = vector.multi_reduction <add>, %61, %cst_28 [1, 2] : vector<1x8x128xf32> to vector<1xf32>
      %63 = vector.shape_cast %62 : vector<1xf32> to vector<1x1x1xf32>
      %64 = vector.extract %63[0, 0, 0] : f32 from vector<1x1x1xf32>
      %65 = vector.broadcast %64 : f32 to vector<1x1xf32>
      %c0_29 = arith.constant 0 : index
      %c0_30 = arith.constant 0 : index
      %c0_31 = arith.constant 0 : index
      %66 = vector.load %arg4[%c0_29, %c0_30, %c0_31] : memref<1x1x1xf32, #tpu.memory_space<vmem>>, vector<1x1x1xf32>
      %67 = vector.shape_cast %66 : vector<1x1x1xf32> to vector<1x1xf32>
      %68 = vector.shape_cast %65 : vector<1x1xf32> to vector<1x1x1xf32>
      tpu.vector_store %arg4[%c0_29, %c0_30, %c0_31], %68 {strides = array<i32>} : memref<1x1x1xf32, #tpu.memory_space<vmem>>, vector<1x1x1xf32>,
      %c0_32 = arith.constant 0 : index
      %c0_33 = arith.constant 0 : index
      %69 = vector.load %arg8[%c0_32, %c0_33] : memref<8x128xf32, #tpu.memory_space<vmem>>, vector<8x128xf32>
      %70 = vector.shape_cast %69 : vector<8x128xf32> to vector<1x8x128xf32>
      %cst_34 = arith.constant dense<0.000000e+00> : vector<1xf32>
      %71 = vector.multi_reduction <add>, %70, %cst_34 [1, 2] : vector<1x8x128xf32> to vector<1xf32>
      %72 = vector.shape_cast %71 : vector<1xf32> to vector<1x1x1xf32>
      %73 = vector.extract %72[0, 0, 0] : f32 from vector<1x1x1xf32>
      %74 = vector.broadcast %73 : f32 to vector<1x1xf32>
      %c0_35 = arith.constant 0 : index
      %c0_36 = arith.constant 0 : index
      %c0_37 = arith.constant 0 : index
      %75 = vector.load %arg5[%c0_35, %c0_36, %c0_37] : memref<1x1x1xf32, #tpu.memory_space<vmem>>, vector<1x1x1xf32>
      %76 = vector.shape_cast %75 : vector<1x1x1xf32> to vector<1x1xf32>
      %77 = vector.shape_cast %74 : vector<1x1xf32> to vector<1x1x1xf32>
      tpu.vector_store %arg5[%c0_35, %c0_36, %c0_37], %77 {strides = array<i32>} : memref<1x1x1xf32, #tpu.memory_space<vmem>>, vector<1x1x1xf32>,
      %c0_38 = arith.constant 0 : index
      %c0_39 = arith.constant 0 : index
      %78 = vector.load %arg9[%c0_38, %c0_39] : memref<8x128xf32, #tpu.memory_space<vmem>>, vector<8x128xf32>
      %79 = vector.shape_cast %78 : vector<8x128xf32> to vector<1x8x128xf32>
      %cst_40 = arith.constant dense<0.000000e+00> : vector<1xf32>
      %80 = vector.multi_reduction <add>, %79, %cst_40 [1, 2] : vector<1x8x128xf32> to vector<1xf32>
      %81 = vector.shape_cast %80 : vector<1xf32> to vector<1x1x1xf32>
      %82 = vector.extract %81[0, 0, 0] : f32 from vector<1x1x1xf32>
      %83 = vector.broadcast %82 : f32 to vector<1x1xf32>
      %c0_41 = arith.constant 0 : index
      %c0_42 = arith.constant 0 : index
      %c0_43 = arith.constant 0 : index
      %84 = vector.load %arg6[%c0_41, %c0_42, %c0_43] : memref<1x1x1xf32, #tpu.memory_space<vmem>>, vector<1x1x1xf32>
      %85 = vector.shape_cast %84 : vector<1x1x1xf32> to vector<1x1xf32>
      %86 = vector.shape_cast %83 : vector<1x1xf32> to vector<1x1x1xf32>
      tpu.vector_store %arg6[%c0_41, %c0_42, %c0_43], %86 {strides = array<i32>} : memref<1x1x1xf32, #tpu.memory_space<vmem>>, vector<1x1x1xf32>,
    } else {
    }
    return
  }
  func.func @transform_0(%arg0: i32, %arg1: i32) -> (i32, i32) {
    %c0_i32 = arith.constant 0 : i32
    %c0_i32_0 = arith.constant 0 : i32
    %c0_i32_1 = arith.constant 0 : i32
    return %c0_i32, %c0_i32_0 : i32, i32
  }
  func.func @transform_1(%arg0: i32, %arg1: i32) -> (i32, i32, i32) {
    %c0_i32 = arith.constant 0 : i32
    %c0_i32_0 = arith.constant 0 : i32
    return %arg0, %arg1, %c0_i32 : i32, i32, i32
  }
  func.func @transform_2(%arg0: i32, %arg1: i32) -> (i32, i32, i32) {
    %c0_i32 = arith.constant 0 : i32
    %c0_i32_0 = arith.constant 0 : i32
    %c0_i32_1 = arith.constant 0 : i32
    return %arg0, %c0_i32, %c0_i32_0 : i32, i32, i32
  }
  func.func @transform_3(%arg0: i32, %arg1: i32) -> (i32, i32, i32) {
    %c0_i32 = arith.constant 0 : i32
    %c0_i32_0 = arith.constant 0 : i32
    %c0_i32_1 = arith.constant 0 : i32
    return %arg0, %c0_i32, %c0_i32_0 : i32, i32, i32
  }
  func.func @transform_4(%arg0: i32, %arg1: i32) -> (i32, i32, i32) {
    %c0_i32 = arith.constant 0 : i32
    %c0_i32_0 = arith.constant 0 : i32
    %c0_i32_1 = arith.constant 0 : i32
    return %arg0, %c0_i32, %c0_i32_0 : i32, i32, i32
  }
}

</mosaic_0001>

<llo_original>
// kernel: tpu_custom_call.1
$region0: #{tpu_custom_call.1}
  #allocation0 [shape = 'u32[]', space=smem, size = 0x4, offset = 0x4, fixed_abs, tag = 'smem constant byte address 0x4 - core index']
  #allocation1 [shape = 'u32[144,128]{1,0:T(1,128)}', space=vmem, size = 0x12000, scoped, tag = 'internal scratch']
  #allocation2 [shape = 'f32[8,128]{1,0:T(8,128)}', space=vmem, size = 0x1000, scoped, tag = 'scratch operand']
  #allocation3 [shape = 'f32[8,128]{1,0:T(8,128)}', space=vmem, size = 0x1000, scoped, tag = 'scratch operand']
  #allocation4 [shape = 'f32[8,128]{1,0:T(8,128)}', space=vmem, size = 0x1000, scoped, tag = 'scratch operand']
  #allocation5 [shape = 'f32[1,128]{1,0:T(1,128)}', space=vmem, size = 0x200, scoped, tag = 'scratch operand']
  %s0 = inlined_call_operand.hbm [shape: f32[2,128], index: 0, kind: input, shape index: {}]
  %s1 = inlined_call_operand.hbm [shape: f32[6,20,128], index: 1, kind: input, shape index: {}]
  %s2 = inlined_call_operand.vmem [shape: f32[6,1,1], index: 2, kind: output, shape index: {0}]
  %s3 = inlined_call_operand.vmem [shape: f32[6,1,1], index: 3, kind: output, shape index: {1}]
  %s4 = inlined_call_operand.vmem [shape: f32[6,1,1], index: 4, kind: output, shape index: {2}]
  %5 = xla_tuple %s2, %s3, %s4
  %s6 = sld [smem:[#allocation0]]
  $region73: #{tpu_custom_call.1} parent=0
    _
  %s8 = ssub.s32 1, %s6
  %s9 = scalar_select 0, %s8, %s6
  $region1: #{tpu_custom_call.1} parent=0
    #allocation6 [shape = 'u8[1024]{0}', space=vmem, size = 0x400, scoped, tag = 'input window, operand 0, single buffered']
    #allocation7 [shape = 's32[2]{0}', space=sflag, size = 0x8, scoped, tag = 'scoped memory for tpu_custom_call.1']
    #allocation8 [shape = 'u8[8192]{0}', space=vmem, size = 0x2000, scoped, tag = 'input window, operand 1']
    #allocation9 [shape = 's32[2]{0}', space=sflag, size = 0x8, scoped, tag = 'scoped memory for tpu_custom_call.1']
    %10 = vsyncpa [#allocation7], 0
    %11 = vsyncpa [#allocation9], 0
    %s12 = scalar_lea.sflag [#allocation9], 1
    %13 = vsyncpa %s12, 0
    loop: start=0, step=1, limit=20
    $region2: #{tpu_custom_call.1} parent=1 // loop_pre_header
      _
    $region3: #{tpu_custom_call.1} parent=1 // loop_header
      %s15 = sphi 0, %s19
      %p16 = scmp.ge.s32.totalorder %s15, 20
      %s22 = sphi 0, %s34
      %s23 = sphi 0, %s30
      %s24 = sphi 0, %s22
      %s25 = sphi 0, %s23
      %s26 = sphi 0, %s24
      %s27 = sphi 0, %s25
      %s35 = sphi 0, %s35
      %s37 = sphi 0, %s35
      %s38 = sphi 0, %s37
      %s52 = sphi 0, %s38
      %s60 = sphi 0, %s62
      %s63 = sphi 0, %s60
      %s64 = sphi 0, %s63
      %s80 = sphi 0, %s64
      %s86 = sphi 0, %s88
      %s89 = sphi 0, %s86
      %s90 = sphi 0, %s89
      %s106 = sphi 0, %s90
      %s112 = sphi 0, %s114
      %s115 = sphi 0, %s112
      %s116 = sphi 0, %s115
      %s132 = sphi 0, %s116
      %s138 = sphi 0, %s140
      %s141 = sphi 0, %s138
      %s142 = sphi 0, %s141
      %s158 = sphi 0, %s142
    $region4: #{tpu_custom_call.1} parent=1 // loop_header_branch
      %18 = sbr.rel (%p16) target = $region8
    $region5: #{tpu_custom_call.1} parent=1 // loop_body
      %s20 = ssub.s32 %s15, 1
      %s21 = ssub.s32 %s15, 2
      %s28 = sadd.s32 1, %s23
      %p29 = scmp.ge.s32.totalorder %s28, 3
      %s30 = scalar_select %p29, 0, %s28
      %s31 = sadd.s32 1, %s22
      %s32 = scalar_select %p29, %s31, %s22
      %p33 = scmp.ge.s32.totalorder %s32, 6
      %s34 = scalar_select %p33, 0, %s32
      %s36 = sadd.s32 %s35, 1
      %p39 = scmp.eq.s32.totalorder %s15, 17
      %p40 = scmp.ne.s32.totalorder %s35, %s37
      %p41 = scmp.eq.s32.totalorder %s15, 0
      %p42 = por %p40, %p41
      %p43 = scmp.ne.s32.totalorder %s35, %s37
      %p44 = scmp.eq.s32.totalorder %s20, 17
      %p45 = por %p43, %p44
      %p46 = scmp.ne.s32.totalorder %s37, %s38
      %p47 = scmp.eq.s32.totalorder %s20, 0
      %p48 = por %p46, %p47
      %p49 = scmp.ne.s32.totalorder %s37, %s38
      %p50 = scmp.eq.s32.totalorder %s21, 17
      %p51 = por %p49, %p50
      %p53 = scmp.ne.s32.totalorder %s38, %s52
      %p54 = scmp.eq.s32.totalorder %s21, 0
      %p55 = por %p53, %p54
      %s56 = ssub.s32 %s22, %s34
      %s57 = ssub.s32 %s23, %s30
      %s58 = sor.u32 %s56, %s57
      %p59 = scmp.eq.s32.totalorder %s58, 0
      %s61 = sadd.s32 %s60, 1
      %s62 = scalar_select %p59, %s60, %s61
      %p65 = pneg %p59
      %p66 = scmp.eq.s32.totalorder %s15, 17
      %p67 = por %p65, %p66
      %p68 = scmp.ne.s32.totalorder %s60, %s63
      %p69 = scmp.eq.s32.totalorder %s15, 0
      %p70 = por %p68, %p69
      %p71 = scmp.ne.s32.totalorder %s60, %s63
      %p72 = scmp.eq.s32.totalorder %s20, 17
      %p73 = por %p71, %p72
      %p74 = scmp.ne.s32.totalorder %s63, %s64
      %p75 = scmp.eq.s32.totalorder %s20, 0
      %p76 = por %p74, %p75
      %p77 = scmp.ne.s32.totalorder %s63, %s64
      %p78 = scmp.eq.s32.totalorder %s21, 17
      %p79 = por %p77, %p78
      %p81 = scmp.ne.s32.totalorder %s64, %s80
      %p82 = scmp.eq.s32.totalorder %s21, 0
      %p83 = por %p81, %p82
      %s84 = ssub.s32 %s22, %s34
      %p85 = scmp.eq.s32.totalorder %s84, 0
      %s87 = sadd.s32 %s86, 1
      %s88 = scalar_select %p85, %s86, %s87
      %p91 = pneg %p85
      %p92 = scmp.eq.s32.totalorder %s15, 17
      %p93 = por %p91, %p92
      %p94 = scmp.ne.s32.totalorder %s86, %s89
      %p95 = scmp.eq.s32.totalorder %s15, 0
      %p96 = por %p94, %p95
      %p97 = scmp.ne.s32.totalorder %s86, %s89
      %p98 = scmp.eq.s32.totalorder %s20, 17
      %p99 = por %p97, %p98
      %p100 = scmp.ne.s32.totalorder %s89, %s90
      %p101 = scmp.eq.s32.totalorder %s20, 0
      %p102 = por %p100, %p101
      %p103 = scmp.ne.s32.totalorder %s89, %s90
      %p104 = scmp.eq.s32.totalorder %s21, 17
      %p105 = por %p103, %p104
      %p107 = scmp.ne.s32.totalorder %s90, %s106
      %p108 = scmp.eq.s32.totalorder %s21, 0
      %p109 = por %p107, %p108
      %s110 = ssub.s32 %s22, %s34
      %p111 = scmp.eq.s32.totalorder %s110, 0
      %s113 = sadd.s32 %s112, 1
      %s114 = scalar_select %p111, %s112, %s113
      %p117 = pneg %p111
      %p118 = scmp.eq.s32.totalorder %s15, 17
      %p119 = por %p117, %p118
      %p120 = scmp.ne.s32.totalorder %s112, %s115
      %p121 = scmp.eq.s32.totalorder %s15, 0
      %p122 = por %p120, %p121
      %p123 = scmp.ne.s32.totalorder %s112, %s115
      %p124 = scmp.eq.s32.totalorder %s20, 17
      %p125 = por %p123, %p124
      %p126 = scmp.ne.s32.totalorder %s115, %s116
      %p127 = scmp.eq.s32.totalorder %s20, 0
      %p128 = por %p126, %p127
      %p129 = scmp.ne.s32.totalorder %s115, %s116
      %p130 = scmp.eq.s32.totalorder %s21, 17
      %p131 = por %p129, %p130
      %p133 = scmp.ne.s32.totalorder %s116, %s132
      %p134 = scmp.eq.s32.totalorder %s21, 0
      %p135 = por %p133, %p134
      %s136 = ssub.s32 %s22, %s34
      %p137 = scmp.eq.s32.totalorder %s136, 0
      %s139 = sadd.s32 %s138, 1
      %s140 = scalar_select %p137, %s138, %s139
      %p143 = pneg %p137
      %p144 = scmp.eq.s32.totalorder %s15, 17
      %p145 = por %p143, %p144
      %p146 = scmp.ne.s32.totalorder %s138, %s141
      %p147 = scmp.eq.s32.totalorder %s15, 0
      %p148 = por %p146, %p147
      %p149 = scmp.ne.s32.totalorder %s138, %s141
      %p150 = scmp.eq.s32.totalorder %s20, 17
      %p151 = por %p149, %p150
      %p152 = scmp.ne.s32.totalorder %s141, %s142
      %p153 = scmp.eq.s32.totalorder %s20, 0
      %p154 = por %p152, %p153
      %p155 = scmp.ne.s32.totalorder %s141, %s142
      %p156 = scmp.eq.s32.totalorder %s21, 17
      %p157 = por %p155, %p156
      %p159 = scmp.ne.s32.totalorder %s142, %s158
      %p160 = scmp.eq.s32.totalorder %s21, 0
      %p161 = por %p159, %p160
      %p162 = scmp.le.s32.totalorder 1, %s15
      %p163 = scmp.lt.s32.totalorder %s15, 19
      %p164 = pnand %p162, %p163
      %p165 = pneg %p164
      // Predicated region
      $region9: #{tpu_custom_call.1} parent=5 // pred_check
        _
      $region10: #{tpu_custom_call.1} parent=5 // pred_check_branch
        %167 = sbr.rel (%p164) target = $region12
      $region11: #{tpu_custom_call.1} parent=5 // pred_region
        %s168 = ssub.s32 %s15, 1
        // Predicated region
        $region13: #{tpu_custom_call.1} parent=11 // pred_check
          %p169 = pneg %p48
        $region14: #{tpu_custom_call.1} parent=11 // pred_check_branch
          %171 = sbr.rel (%p169) target = $region16
        $region15: #{tpu_custom_call.1} parent=11 // pred_region
          %s173 = ssub.s32 32, 32
          %174 = vsyncadd [#allocation7], %s173
          %s176 = sshll.u32 [#allocation6], 4
          %s177 = int_to_ptr.vmem [resolvable:$true] %s176
          %179 = dma.hbm_to_vmem [thread:$0]  %s0, 32, %s177, [#allocation7]
        $region16: #{tpu_custom_call.1} parent=11 // pred_fallthru
          _
      $region12: #{tpu_custom_call.1} parent=5 // pred_fallthru
        _
      %p180 = scmp.lt.s32.totalorder %s15, 18
      // Predicated region
      $region17: #{tpu_custom_call.1} parent=5 // pred_check
        %p181 = pneg %p180
      $region18: #{tpu_custom_call.1} parent=5 // pred_check_branch
        %183 = sbr.rel (%p181) target = $region20
      $region19: #{tpu_custom_call.1} parent=5 // pred_region
        // Predicated region
        $region21: #{tpu_custom_call.1} parent=19 // pred_check
          %p184 = pneg %p70
        $region22: #{tpu_custom_call.1} parent=19 // pred_check_branch
          %186 = sbr.rel (%p184) target = $region24
        $region23: #{tpu_custom_call.1} parent=19 // pred_region
          %s187 = sand.u32 %s60, 1
          %s188 = scalar_lea.sflag [#allocation9], %s187
          %s189 = sand.u32 %s60, 1
          %s190 = smul.addr %s189, 8
          %s191 = scalar_lea.vmem [#allocation8], %s190
          %s193 = ssub.s32 128, 128
          %194 = vsyncadd %s188, %s193
          %s195 = smul.addr %s22, 3
          %s196 = sadd.s32 %s23, %s195
          %s197 = smul.addr %s196, 128
          %s198 = scalar_lea.hbm %s1, %s197
          %s200 = sshll.u32 %s191, 4
          %s201 = int_to_ptr.vmem [resolvable:$true] %s200
          %203 = dma.hbm_to_vmem [thread:$0]  %s198, 128, %s201, %s188
        $region24: #{tpu_custom_call.1} parent=19 // pred_fallthru
          _
      $region20: #{tpu_custom_call.1} parent=5 // pred_fallthru
        _
      %p204 = scmp.le.s32.totalorder 1, %s15
      %p205 = scmp.lt.s32.totalorder %s15, 19
      %p206 = pnand %p204, %p205
      %p207 = pneg %p206
      // Predicated region
      $region25: #{tpu_custom_call.1} parent=5 // pred_check
        _
      $region26: #{tpu_custom_call.1} parent=5 // pred_check_branch
        %209 = sbr.rel (%p206) target = $region28
      $region27: #{tpu_custom_call.1} parent=5 // pred_region
        %s210 = ssub.s32 %s15, 1
        // Predicated region
        $region29: #{tpu_custom_call.1} parent=27 // pred_check
          %p211 = pneg %p48
        $region30: #{tpu_custom_call.1} parent=27 // pred_check_branch
          %213 = sbr.rel (%p211) target = $region32
        $region31: #{tpu_custom_call.1} parent=27 // pred_region
          %214 = dma.done [#allocation7], 32
        $region32: #{tpu_custom_call.1} parent=27 // pred_fallthru
          _
        %s215 = sand.u32 %s63, 1
        %s216 = scalar_lea.sflag [#allocation9], %s215
        %s217 = sand.u32 %s63, 1
        %s218 = smul.addr %s217, 8
        %s219 = scalar_lea.vmem [#allocation8], %s218
        // Predicated region
        $region33: #{tpu_custom_call.1} parent=27 // pred_check
          %p220 = pneg %p76
        $region34: #{tpu_custom_call.1} parent=27 // pred_check_branch
          %222 = sbr.rel (%p220) target = $region36
        $region35: #{tpu_custom_call.1} parent=27 // pred_region
          %223 = dma.done %s216, 128
        $region36: #{tpu_custom_call.1} parent=27 // pred_fallthru
          _
        %p224 = pneg %p48
        %p225 = pneg %p45
        %s226 = sand.u32 %s63, 1
        %s227 = scalar_lea.sflag [#allocation9], %s226
        %s228 = sand.u32 %s63, 1
        %s229 = smul.addr %s228, 8
        %s230 = scalar_lea.vmem [#allocation8], %s229
        %p231 = pneg %p76
        %p232 = pneg %p73
        %p233 = pneg %p102
        %p234 = pneg %p99
        %p235 = scmp.lt.s32.totalorder %s24, 5
        %s236 = scalar_select %p235, %s24, 5
        %s237 = scalar_lea.vmem %s2, %s236
        %p238 = pneg %p128
        %p239 = pneg %p125
        %p240 = scmp.lt.s32.totalorder %s24, 5
        %s241 = scalar_select %p240, %s24, 5
        %s242 = scalar_lea.vmem %s3, %s241
        %p243 = pneg %p154
        %p244 = pneg %p151
        %p245 = scmp.lt.s32.totalorder %s24, 5
        %s246 = scalar_select %p245, %s24, 5
        %s247 = scalar_lea.vmem %s4, %s246
        %p248 = scmp.lt.s32.totalorder %s24, 5
        %s249 = scalar_select %p248, %s24, 5
        %s250 = scalar_lea.vmem %s2, %s249
        %p251 = scmp.lt.s32.totalorder %s24, 5
        %s252 = scalar_select %p251, %s24, 5
        %s253 = scalar_lea.vmem %s3, %s252
        %p254 = scmp.lt.s32.totalorder %s24, 5
        %s255 = scalar_select %p254, %s24, 5
        %s256 = scalar_lea.vmem %s4, %s255
        %v257 = vld [vmem:[%s219] sm:$0xff]
        %p258 = scmp.eq.s32.totalorder %s25, 0
        // Predicated region
        $region37: #{tpu_custom_call.1} parent=27 // pred_check
          %p259 = pneg %p258
        $region38: #{tpu_custom_call.1} parent=27 // pred_check_branch
          %261 = sbr.rel (%p259) target = $region40
        $region39: #{tpu_custom_call.1} parent=27 // pred_region
          %262 = vst [vmem:[#allocation2] sm:$0xff] 0.0
          %263 = vst [vmem:[#allocation3] sm:$0xff] 0.0
          %264 = vst [vmem:[#allocation4] sm:$0xff] 0.0
          %265 = vst [vmem:[#allocation5] sm:$0x1] %v257
        $region40: #{tpu_custom_call.1} parent=27 // pred_fallthru
          _
        %v266 = vlaneseq
        %v267 = vshrl.u32 %v266, 7
        %s268 = smul.u32 %s25, 8
        %v269 = vstv %s268
        %v270 = vadd.s32 %v269, %v267
        %vm271 = vcmp.lt.s32.totalorder %v270, 20
        %v272 = vrot.slane %v257, 7
        %vm273 = vcmp.eq.s32.totalorder %v267, 0
        %v274 = vld [vmem:[#allocation5] sm:$0x1]
        %v275 = vsel %vm273, 1, 0
        %vm276 = vcmp.eq.s32.totalorder %v275, 1
        %v278 = vlaneseq
        %v279 = vshrl.u32 %v278, 7
        %v280 = vsub.s32 0, %v279
        %v281 = vrot.slane %v274, %v280
        %v283 = vsel %vm276, %v281, %v272
        %v284 = vsub.f32 %v257, %v283
        %v285 = vld [vmem:[#allocation2] sm:$0xff]
        %v286 = vmul.f32 %v284, %v284
        %v287 = vsel %vm271, 1, 0
        %vm288 = vcmp.eq.s32.totalorder %v287, 1
        %v289 = vsel %vm288, %v286, 0.0
        %v290 = vadd.f32 %v285, %v289
        %291 = vst [vmem:[#allocation2] sm:$0xff] %v290
        %292 = vrot.lane.b32.xlu0 %v257, 120
        %v293 = vpop.permute.xlu0 %292
        %v294 = vsub.f32 %v293, %v257
        %v295 = vld [vmem:[#allocation3] sm:$0xff]
        %v296 = vmul.f32 %v294, %v294
        %v297 = vld [vmem:[#allocation6 + $0x1] sm:$0x1]
        %v298 = vlaneseq
        %v299 = vshrl.u32 %v298, 7
        %v300 = vsub.s32 0, %v299
        %v301 = vrot.slane %v297, %v300
        %v302 = vmul.f32 %v296, %v301
        %v303 = vsel %vm288, %v302, 0.0
        %v304 = vadd.f32 %v295, %v303
        %305 = vst [vmem:[#allocation3] sm:$0xff] %v304
        %306 = vrot.lane.b32.xlu0 %v257, 127
        %v307 = vpop.permute.xlu0 %306
        %v308 = vsub.f32 %v307, %v257
        %v309 = vld [vmem:[#allocation4] sm:$0xff]
        %v310 = vmul.f32 %v308, %v308
        %v311 = vld [vmem:[#allocation6] sm:$0x1]
        %v312 = vlaneseq
        %v313 = vshrl.u32 %v312, 7
        %v314 = vsub.s32 0, %v313
        %v315 = vrot.slane %v311, %v314
        %v316 = vmul.f32 %v310, %v315
        %v317 = vsel %vm288, %v316, 0.0
        %v318 = vadd.f32 %v309, %v317
        %319 = vst [vmem:[#allocation4] sm:$0xff] %v318
        %320 = vst [vmem:[#allocation5 - $0x7] sm:$0x80] %v257
        %p321 = scmp.eq.s32.totalorder %s25, 2
        // Predicated region
        $region41: #{tpu_custom_call.1} parent=27 // pred_check
          %p322 = pneg %p321
        $region42: #{tpu_custom_call.1} parent=27 // pred_check_branch
          %324 = sbr.rel (%p322) target = $region44
        $region43: #{tpu_custom_call.1} parent=27 // pred_region
          %v325 = vld [vmem:[#allocation2] sm:$0xff]
          %326 = vadd.xlane.f32.xlu0 %v325
          %v327 = vpop.xlane.xlu0 %326
          %v328 = vrot.slane %v327, 4
          %v329 = vadd.f32 %v327, %v328
          %v330 = vrot.slane %v329, 2
          %v331 = vadd.f32 %v329, %v330
          %v332 = vrot.slane %v331, 1
          %v333 = vadd.f32 %v331, %v332
          %s334 = vtos %v333
          %v335 = vstv %s334
          %vm336 = vcmask 0
          %337 = vst.msk [vmem:[%s250] sm:$0x1] %vm336, %v335
          %v338 = vld [vmem:[#allocation3] sm:$0xff]
          %339 = vadd.xlane.f32.xlu0 %v338
          %v340 = vpop.xlane.xlu0 %339
          %v341 = vrot.slane %v340, 4
          %v342 = vadd.f32 %v340, %v341
          %v343 = vrot.slane %v342, 2
          %v344 = vadd.f32 %v342, %v343
          %v345 = vrot.slane %v344, 1
          %v346 = vadd.f32 %v344, %v345
          %s347 = vtos %v346
          %v348 = vstv %s347
          %349 = vst.msk [vmem:[%s253] sm:$0x1] %vm336, %v348
          %v350 = vld [vmem:[#allocation4] sm:$0xff]
          %351 = vadd.xlane.f32.xlu0 %v350
          %v352 = vpop.xlane.xlu0 %351
          %v353 = vrot.slane %v352, 4
          %v354 = vadd.f32 %v352, %v353
          %v355 = vrot.slane %v354, 2
          %v356 = vadd.f32 %v354, %v355
          %v357 = vrot.slane %v356, 1
          %v358 = vadd.f32 %v356, %v357
          %s359 = vtos %v358
          %v360 = vstv %s359
          %361 = vst.msk [vmem:[%s256] sm:$0x1] %vm336, %v360
        $region44: #{tpu_custom_call.1} parent=27 // pred_fallthru
          _
        %p362 = scmp.lt.s32.totalorder %s24, 5
        %s363 = scalar_select %p362, %s24, 5
        %s364 = scalar_lea.vmem %s2, %s363
        %p365 = scmp.lt.s32.totalorder %s24, 5
        %s366 = scalar_select %p365, %s24, 5
        %s367 = scalar_lea.vmem %s3, %s366
        %p368 = scmp.lt.s32.totalorder %s24, 5
        %s369 = scalar_select %p368, %s24, 5
        %s370 = scalar_lea.vmem %s4, %s369
        // Predicated region
        $region45: #{tpu_custom_call.1} parent=27 // pred_check
          %p371 = pneg %p99
        $region46: #{tpu_custom_call.1} parent=27 // pred_check_branch
          %373 = sbr.rel (%p371) target = $region48
        $region47: #{tpu_custom_call.1} parent=27 // pred_region
          _
        $region48: #{tpu_custom_call.1} parent=27 // pred_fallthru
          _
        // Predicated region
        $region49: #{tpu_custom_call.1} parent=27 // pred_check
          %p374 = pneg %p125
        $region50: #{tpu_custom_call.1} parent=27 // pred_check_branch
          %376 = sbr.rel (%p374) target = $region52
        $region51: #{tpu_custom_call.1} parent=27 // pred_region
          _
        $region52: #{tpu_custom_call.1} parent=27 // pred_fallthru
          _
        // Predicated region
        $region53: #{tpu_custom_call.1} parent=27 // pred_check
          %p377 = pneg %p151
        $region54: #{tpu_custom_call.1} parent=27 // pred_check_branch
          %379 = sbr.rel (%p377) target = $region56
        $region55: #{tpu_custom_call.1} parent=27 // pred_region
          _
        $region56: #{tpu_custom_call.1} parent=27 // pred_fallthru
          _
      $region28: #{tpu_custom_call.1} parent=5 // pred_fallthru
        _
      %p380 = scmp.le.s32.totalorder 2, %s15
      // Predicated region
      $region57: #{tpu_custom_call.1} parent=5 // pred_check
        %p381 = pneg %p380
      $region58: #{tpu_custom_call.1} parent=5 // pred_check_branch
        %383 = sbr.rel (%p381) target = $region60
      $region59: #{tpu_custom_call.1} parent=5 // pred_region
        %s384 = ssub.s32 %s15, 2
        // Predicated region
        $region61: #{tpu_custom_call.1} parent=59 // pred_check
          %p385 = pneg %p105
        $region62: #{tpu_custom_call.1} parent=59 // pred_check_branch
          %387 = sbr.rel (%p385) target = $region64
        $region63: #{tpu_custom_call.1} parent=59 // pred_region
          %p388 = scmp.lt.s32.totalorder %s26, 5
          %s389 = scalar_select %p388, %s26, 5
          %s390 = scalar_lea.vmem %s2, %s389
        $region64: #{tpu_custom_call.1} parent=59 // pred_fallthru
          _
        // Predicated region
        $region65: #{tpu_custom_call.1} parent=59 // pred_check
          %p391 = pneg %p131
        $region66: #{tpu_custom_call.1} parent=59 // pred_check_branch
          %393 = sbr.rel (%p391) target = $region68
        $region67: #{tpu_custom_call.1} parent=59 // pred_region
          %p394 = scmp.lt.s32.totalorder %s26, 5
          %s395 = scalar_select %p394, %s26, 5
          %s396 = scalar_lea.vmem %s3, %s395
        $region68: #{tpu_custom_call.1} parent=59 // pred_fallthru
          _
        // Predicated region
        $region69: #{tpu_custom_call.1} parent=59 // pred_check
          %p397 = pneg %p157
        $region70: #{tpu_custom_call.1} parent=59 // pred_check_branch
          %399 = sbr.rel (%p397) target = $region72
        $region71: #{tpu_custom_call.1} parent=59 // pred_region
          %p400 = scmp.lt.s32.totalorder %s26, 5
          %s401 = scalar_select %p400, %s26, 5
          %s402 = scalar_lea.vmem %s4, %s401
        $region72: #{tpu_custom_call.1} parent=59 // pred_fallthru
          _
      $region60: #{tpu_custom_call.1} parent=5 // pred_fallthru
        _
    $region6: #{tpu_custom_call.1} parent=1 // loop_footer
      %s19 = sadd.s32 1, %s15
    $region7: #{tpu_custom_call.1} parent=1 // loop_footer_branch
      %14 = sbr.rel target = $region3
    $region8: #{tpu_custom_call.1} parent=1 // loop_exit
      _
    %403 = vsyncpa [#allocation7], 1
    %s404 = scalar_lea.sflag [#allocation7], 1
    %405 = vsyncpa %s404, 1
    %406 = vsyncpa [#allocation9], 1
    %s407 = scalar_lea.sflag [#allocation9], 1
    %408 = vsyncpa %s407, 1

</llo_original>
